<compile_context>
chip_gen: v7x
topology: tpu7x:2x2x1
jax: 0.10.0
libtpu: 0.0.40
codegen_flags: <defaults>
</compile_context>

<pallas_src>
import math
import functools

import jax
import jax.numpy as jnp
from jax import lax
from jax.experimental import pallas as pl
from jax.experimental.pallas import tpu as pltpu


# ---------------------------------------------------------------------------
# Parameter / buffer setup (plain JAX glue) — mirrors the module's __init__
# ---------------------------------------------------------------------------
def make_sinusoidal_pe(max_len: int, d_model: int) -> jnp.ndarray:
    position = jnp.arange(max_len, dtype=jnp.float32)[:, None]               # (max_len, 1)
    div_term = jnp.exp(
        jnp.arange(0, d_model, 2, dtype=jnp.float32) * (-math.log(10000.0) / d_model)
    )                                                                         # (d_model/2,)
    pe = jnp.zeros((max_len, d_model), dtype=jnp.float32)
    pe = pe.at[:, 0::2].set(jnp.sin(position * div_term))
    pe = pe.at[:, 1::2].set(jnp.cos(position * div_term))
    return pe


# ---------------------------------------------------------------------------
# Static tiling helpers
# ---------------------------------------------------------------------------
def _chip_tiling_params():
    """(target_tile_bytes, vmem_limit_cap) tuned per TPU generation."""
    try:
        vmem = getattr(pltpu.get_tpu_info(), "vmem_capacity_bytes", None)
    except Exception:
        vmem = None
    if vmem is not None and vmem >= (96 << 20):       # v5e / v6e: 128 MiB VMEM
        return 8 << 20, 64 << 20
    return 4 << 20, 40 << 20                          # v7x (64 MiB) / unknown


def _choose_flat_layout(total: int, target_lane: int = 512):
    """Lane-dense flattening (n_rows, lane, padded_total) of a length-`total` slab."""
    max_lane = min(target_lane, (total // 128) * 128)
    for lane in range(max_lane, 0, -128):
        if total % lane == 0:
            return total // lane, lane, total          # exact, no padding
    # Pad up to a multiple of a lane-dense width -> unmasked full-width stores.
    lane = min(target_lane, ((total + 127) // 128) * 128)
    padded = ((total + lane - 1) // lane) * lane
    return padded // lane, lane, padded


def _choose_row_tile(n_rows: int, lane: int, itemsize: int, target_bytes: int) -> int:
    """Largest sublane-aligned row tile with tile_bytes <= target_bytes."""
    sublane = max(1, 32 // itemsize)                   # 8 f32 / 16 bf16 / 32 int8
    cap = max(sublane, (target_bytes // (lane * itemsize)) // sublane * sublane)
    return min(n_rows, cap)


# ---------------------------------------------------------------------------
# Pallas kernel:  out_tile = dropout(x_tile + pe_tile)
# ---------------------------------------------------------------------------
def _pe_dropout_kernel(seed_ref, x_ref, pe_ref, o_ref, *,
                       p: float, train: bool, n_rows: int, t_rows: int, lane: int):
    # x_ref / o_ref: (t_rows, lane) VMEM tile of one batch element (batch squeezed).
    # pe_ref:        (t_rows, lane) VMEM tile, shared by every batch element.
    y = x_ref[...] + pe_ref[...]

    if train and p >= 1.0:                             # degenerate: drop everything
        o_ref[...] = jnp.zeros(o_ref.shape, o_ref.dtype)
        return

    if train and p > 0.0:
        # Counter-based Bernoulli mask: hash(global element index, seed).
        # Pure VPU int ops -> portable (no pltpu.prng_* needed), grid-invariant.
        r_u = pl.program_id(0).astype(jnp.uint32)
        b_u = pl.program_id(1).astype(jnp.uint32)
        row_ids = lax.broadcasted_iota(jnp.int32, y.shape, 0).astype(jnp.uint32)
        col_ids = lax.broadcasted_iota(jnp.int32, y.shape, 1).astype(jnp.uint32)
        row0 = b_u * jnp.uint32(n_rows) + r_u * jnp.uint32(t_rows)
        idx = (row0 + row_ids) * jnp.uint32(lane) + col_ids

        seed = seed_ref[0].astype(jnp.uint32)
        h = idx ^ (seed * jnp.uint32(0x9E3779B9))
        h = h ^ (h >> 16)
        h = h * jnp.uint32(0x7FEB352D)
        h = h ^ (h >> 15)
        h = h * jnp.uint32(0x846CA68B)
        h = h ^ (h >> 16)

        threshold = jnp.uint32(min(int(round(p * 2.0 ** 32)), 2 ** 32 - 1))
        keep = h >= threshold                          # P(keep) = 1 - p
        scale = jnp.asarray(1.0 / (1.0 - p), dtype=y.dtype)
        y = jnp.where(keep, y * scale, jnp.zeros_like(y))

    o_ref[...] = y.astype(o_ref.dtype)


def positional_encoding_forward(x, pe, *, p: float = 0.1, train: bool = False,
                                seed: int = 0, donate_x: bool = False):
    """x: (B, T, D); pe: (max_len, D) with max_len >= T."""
    B, T, D = x.shape
    total = T * D
    itemsize = jnp.dtype(x.dtype).itemsize

    n_rows, lane, padded = _choose_flat_layout(total)
    target_bytes, vmem_cap = _chip_tiling_params()
    t_rows = _choose_row_tile(n_rows, lane, itemsize, target_bytes)
    grid = (pl.cdiv(n_rows, t_rows), B)                # outer: row tiles, inner: batch

    x_flat = x.reshape(B, total)
    pe_flat = pe[:T].astype(x.dtype).reshape(total)
    if padded != total:                                # lane-dense zero padding
        x_flat = jnp.pad(x_flat, ((0, 0), (0, padded - total)))
        pe_flat = jnp.pad(pe_flat, (0, padded - total))
    x_flat = x_flat.reshape(B, n_rows, lane)
    pe_flat = pe_flat.reshape(n_rows, lane)
    seed_arr = jnp.array([seed], dtype=jnp.int32)

    tile_bytes = t_rows * lane * itemsize
    # x, out, pe each double-buffered (~6 tiles) + headroom; chip-aware cap.
    vmem_limit = int(min(max(8 * tile_bytes, 16 << 20), vmem_cap))

    kernel = functools.partial(_pe_dropout_kernel, p=float(p), train=bool(train),
                               n_rows=n_rows, t_rows=t_rows, lane=lane)
    out_flat = pl.pallas_call(
        kernel,
        out_shape=jax.ShapeDtypeStruct((B, n_rows, lane), x.dtype),
        grid=grid,
        in_specs=[
            pl.BlockSpec(memory_space=pltpu.MemorySpace.SMEM),                # seed scalar
            pl.BlockSpec((None, t_rows, lane), lambda r, b: (b, r, 0)),       # x tile (batch squeezed)
            pl.BlockSpec((t_rows, lane), lambda r, b: (r, 0)),                # pe: outer axis only
        ],
        out_specs=pl.BlockSpec((None, t_rows, lane), lambda r, b: (b, r, 0)),
        compiler_params=pltpu.CompilerParams(
            dimension_semantics=("parallel", "parallel"),
            vmem_limit_bytes=vmem_limit,
        ),
        input_output_aliases=({1: 0} if donate_x else {}),
    )(seed_arr, x_flat, pe_flat)

    return out_flat.reshape(B, padded)[:, :total].reshape(B, T, D)


# ---------------------------------------------------------------------------
# Pure-JAX reference (eval mode) for correctness check
# ---------------------------------------------------------------------------
def positional_encoding_ref(x, pe):
    T = x.shape[1]
    return x + pe[:T][None, :, :]


if __name__ == "__main__":
    d_model, max_len = 32, 16
    B, T = 2, 8

    key = jax.random.PRNGKey(0)
    x = jax.random.normal(key, (B, T, d_model), dtype=jnp.float32)
    pe = make_sinusoidal_pe(max_len, d_model)

    # Eval mode (nn.Dropout is identity) — deterministic, exact check.
    out = positional_encoding_forward(x, pe, p=0.1, train=False)
    out = jax.block_until_ready(out)
    ref = positional_encoding_ref(x, pe)
    assert out.shape == (B, T, d_model)
    assert jnp.allclose(out, ref, atol=1e-6, rtol=1e-6), "eval-mode mismatch vs reference"

    # Train mode — every element must be either 0 (dropped) or (x+pe)/(1-p) (kept).
    # TODO(synk): torch's RNG stream cannot be bit-matched; Bernoulli keep +
    # 1/(1-p) scaling semantics are identical.
    p = 0.1
    out_tr = positional_encoding_forward(x, pe, p=p, train=True, seed=1234)
    out_tr = jax.block_until_ready(out_tr)
    scaled = ref * (1.0 / (1.0 - p))
    ok = jnp.isclose(out_tr, 0.0, atol=1e-6) | jnp.isclose(out_tr, scaled, atol=1e-5, rtol=1e-5)
    assert bool(jnp.all(ok)), "train-mode values are not {0, (x+pe)/(1-p)}"

    print("KERNEL_OK")
</pallas_src>

<mosaic_0001>
module attributes {stable_mosaic.version = 11 : i64} {
  func.func @_pe_dropout_kernel(%arg0: i32, %arg1: i32, %arg2: memref<1xi32, #tpu.memory_space<smem>>, %arg3: memref<1x1x256xf32, #tpu.memory_space<vmem>>, %arg4: memref<1x256xf32, #tpu.memory_space<vmem>>, %arg5: memref<1x1x256xf32, #tpu.memory_space<vmem>>) attributes {dimension_semantics = [#tpu.dimension_semantics<parallel>, #tpu.dimension_semantics<parallel>], iteration_bounds = array<i64: 1, 2>, scalar_prefetch = 0 : i64, scratch_operands = 0 : i64, tpu.core_type = #tpu.core_type<tc>, window_params = [{transform_indices = @transform_0, window_bounds = array<i64: 1>}, {transform_indices = @transform_1, window_bounds = array<i64: 1, 1, 256>}, {transform_indices = @transform_2, window_bounds = array<i64: 1, 256>}, {transform_indices = @transform_3, window_bounds = array<i64: 1, 1, 256>}]} {
    %c0 = arith.constant 0 : index
    %c0_0 = arith.constant 0 : index
    %c0_1 = arith.constant 0 : index
    %0 = vector.load %arg3[%c0, %c0_0, %c0_1] : memref<1x1x256xf32, #tpu.memory_space<vmem>>, vector<1x1x256xf32>
    %1 = vector.shape_cast %0 : vector<1x1x256xf32> to vector<1x256xf32>
    %c0_2 = arith.constant 0 : index
    %c0_3 = arith.constant 0 : index
    %2 = vector.load %arg4[%c0_2, %c0_3] : memref<1x256xf32, #tpu.memory_space<vmem>>, vector<1x256xf32>
    %3 = arith.addf %1, %2 : vector<1x256xf32>
    %c0_4 = arith.constant 0 : index
    %c0_5 = arith.constant 0 : index
    %c0_6 = arith.constant 0 : index
    %4 = vector.load %arg5[%c0_4, %c0_5, %c0_6] : memref<1x1x256xf32, #tpu.memory_space<vmem>>, vector<1x1x256xf32>
    %5 = vector.shape_cast %4 : vector<1x1x256xf32> to vector<1x256xf32>
    %6 = vector.shape_cast %3 : vector<1x256xf32> to vector<1x1x256xf32>
    tpu.vector_store %arg5[%c0_4, %c0_5, %c0_6], %6 {strides = array<i32>} : memref<1x1x256xf32, #tpu.memory_space<vmem>>, vector<1x1x256xf32>,
    return
  }
  func.func @transform_0(%arg0: i32, %arg1: i32) -> i32 {
    %c0_i32 = arith.constant 0 : i32
    %c0_i32_0 = arith.constant 0 : i32
    return %c0_i32 : i32
  }
  func.func @transform_1(%arg0: i32, %arg1: i32) -> (i32, i32, i32) {
    %c0_i32 = arith.constant 0 : i32
    %c0_i32_0 = arith.constant 0 : i32
    return %arg1, %arg0, %c0_i32 : i32, i32, i32
  }
  func.func @transform_2(%arg0: i32, %arg1: i32) -> (i32, i32) {
    %c0_i32 = arith.constant 0 : i32
    %c0_i32_0 = arith.constant 0 : i32
    return %arg0, %c0_i32 : i32, i32
  }
  func.func @transform_3(%arg0: i32, %arg1: i32) -> (i32, i32, i32) {
    %c0_i32 = arith.constant 0 : i32
    %c0_i32_0 = arith.constant 0 : i32
    return %arg1, %arg0, %c0_i32 : i32, i32, i32
  }
}

</mosaic_0001>

<llo_original>
// kernel: tpu_custom_call.1
$region0: #{tpu_custom_call.1}
  #allocation0 [shape = 'u32[]', space=smem, size = 0x4, offset = 0x4, fixed_abs, tag = 'smem constant byte address 0x4 - core index']
  #allocation1 [shape = 'u32[144,128]{1,0:T(1,128)}', space=vmem, size = 0x12000, scoped, tag = 'internal scratch']
  #allocation2 [shape = 's32[1]{0:T(128)S(6)}', space=smem, size = 0x200, scoped, tag = 'scoped memory for tpu_custom_call.1']
  %s0 = inlined_call_operand.<no memory space> [shape: s32[1], index: 0, kind: input, shape index: {}]
  %s1 = inlined_call_operand.hbm [shape: f32[2,1,256], index: 1, kind: input, shape index: {}]
  %s2 = inlined_call_operand.vmem [shape: f32[1,256], index: 2, kind: input, shape index: {}]
  %s3 = inlined_call_operand.hbm [shape: f32[2,1,256], index: 3, kind: output, shape index: {}]
  %s4 = sld [smem:[#allocation0]]
  $region49: #{tpu_custom_call.1} parent=0
    _
  %s6 = ssub.s32 1, %s4
  %s7 = scalar_select 0, %s6, %s4
  %8 = sst [smem:[#allocation2]] %s0
  $region1: #{tpu_custom_call.1} parent=0
    #allocation3 [shape = 'u8[2048]{0}', space=vmem, size = 0x800, scoped, tag = 'input window, operand 1']
    #allocation4 [shape = 's32[2]{0}', space=sflag, size = 0x8, scoped, tag = 'scoped memory for tpu_custom_call.1']
    #allocation5 [shape = 's32[2]{0}', space=sflag, size = 0x8, scoped, tag = 'scoped memory for tpu_custom_call.1']
    #allocation6 [shape = 'u8[2048]{0}', space=vmem, size = 0x800, scoped, tag = 'output window, operand 0']
    %9 = vsyncpa [#allocation4], 0
    %s10 = scalar_lea.sflag [#allocation4], 1
    %11 = vsyncpa %s10, 0
    %12 = vsyncpa [#allocation5], 0
    %s13 = scalar_lea.sflag [#allocation5], 1
    %14 = vsyncpa %s13, 0
    loop: start=0, step=1, limit=4
    $region2: #{tpu_custom_call.1} parent=1 // loop_pre_header
      _
    $region3: #{tpu_custom_call.1} parent=1 // loop_header
      %s16 = sphi 0, %s20
      %p17 = scmp.ge.s32.totalorder %s16, 4
      %s23 = sphi 0, %s35
      %s24 = sphi 0, %s31
      %s25 = sphi 0, %s23
      %s26 = sphi 0, %s24
      %s27 = sphi 0, %s25
      %s28 = sphi 0, %s26
      %s36 = sphi 0, %s36
      %s38 = sphi 0, %s36
      %s39 = sphi 0, %s38
      %s53 = sphi 0, %s39
      %s61 = sphi 0, %s63
      %s64 = sphi 0, %s61
      %s65 = sphi 0, %s64
      %s81 = sphi 0, %s65
      %s87 = sphi 0, %s89
      %s90 = sphi 0, %s87
      %s91 = sphi 0, %s90
      %s107 = sphi 0, %s91
      %s115 = sphi 0, %s117
      %s118 = sphi 0, %s115
      %s119 = sphi 0, %s118
      %s135 = sphi 0, %s119
    $region4: #{tpu_custom_call.1} parent=1 // loop_header_branch
      %19 = sbr.rel (%p17) target = $region8
    $region5: #{tpu_custom_call.1} parent=1 // loop_body
      %s21 = ssub.s32 %s16, 1
      %s22 = ssub.s32 %s16, 2
      %s29 = sadd.s32 1, %s24
      %p30 = scmp.ge.s32.totalorder %s29, 2
      %s31 = scalar_select %p30, 0, %s29
      %s32 = sadd.s32 1, %s23
      %s33 = scalar_select %p30, %s32, %s23
      %p34 = scmp.ge.s32.totalorder %s33, 1
      %s35 = scalar_select %p34, 0, %s33
      %s37 = sadd.s32 %s36, 1
      %p40 = scmp.eq.s32.totalorder %s16, 1
      %p41 = scmp.ne.s32.totalorder %s36, %s38
      %p42 = scmp.eq.s32.totalorder %s16, 0
      %p43 = por %p41, %p42
      %p44 = scmp.ne.s32.totalorder %s36, %s38
      %p45 = scmp.eq.s32.totalorder %s21, 1
      %p46 = por %p44, %p45
      %p47 = scmp.ne.s32.totalorder %s38, %s39
      %p48 = scmp.eq.s32.totalorder %s21, 0
      %p49 = por %p47, %p48
      %p50 = scmp.ne.s32.totalorder %s38, %s39
      %p51 = scmp.eq.s32.totalorder %s22, 1
      %p52 = por %p50, %p51
      %p54 = scmp.ne.s32.totalorder %s39, %s53
      %p55 = scmp.eq.s32.totalorder %s22, 0
      %p56 = por %p54, %p55
      %s57 = ssub.s32 %s24, %s31
      %s58 = ssub.s32 %s23, %s35
      %s59 = sor.u32 %s57, %s58
      %p60 = scmp.eq.s32.totalorder %s59, 0
      %s62 = sadd.s32 %s61, 1
      %s63 = scalar_select %p60, %s61, %s62
      %p66 = pneg %p60
      %p67 = scmp.eq.s32.totalorder %s16, 1
      %p68 = por %p66, %p67
      %p69 = scmp.ne.s32.totalorder %s61, %s64
      %p70 = scmp.eq.s32.totalorder %s16, 0
      %p71 = por %p69, %p70
      %p72 = scmp.ne.s32.totalorder %s61, %s64
      %p73 = scmp.eq.s32.totalorder %s21, 1
      %p74 = por %p72, %p73
      %p75 = scmp.ne.s32.totalorder %s64, %s65
      %p76 = scmp.eq.s32.totalorder %s21, 0
      %p77 = por %p75, %p76
      %p78 = scmp.ne.s32.totalorder %s64, %s65
      %p79 = scmp.eq.s32.totalorder %s22, 1
      %p80 = por %p78, %p79
      %p82 = scmp.ne.s32.totalorder %s65, %s81
      %p83 = scmp.eq.s32.totalorder %s22, 0
      %p84 = por %p82, %p83
      %s85 = ssub.s32 %s23, %s35
      %p86 = scmp.eq.s32.totalorder %s85, 0
      %s88 = sadd.s32 %s87, 1
      %s89 = scalar_select %p86, %s87, %s88
      %p92 = pneg %p86
      %p93 = scmp.eq.s32.totalorder %s16, 1
      %p94 = por %p92, %p93
      %p95 = scmp.ne.s32.totalorder %s87, %s90
      %p96 = scmp.eq.s32.totalorder %s16, 0
      %p97 = por %p95, %p96
      %p98 = scmp.ne.s32.totalorder %s87, %s90
      %p99 = scmp.eq.s32.totalorder %s21, 1
      %p100 = por %p98, %p99
      %p101 = scmp.ne.s32.totalorder %s90, %s91
      %p102 = scmp.eq.s32.totalorder %s21, 0
      %p103 = por %p101, %p102
      %p104 = scmp.ne.s32.totalorder %s90, %s91
      %p105 = scmp.eq.s32.totalorder %s22, 1
      %p106 = por %p104, %p105
      %p108 = scmp.ne.s32.totalorder %s91, %s107
      %p109 = scmp.eq.s32.totalorder %s22, 0
      %p110 = por %p108, %p109
      %s111 = ssub.s32 %s24, %s31
      %s112 = ssub.s32 %s23, %s35
      %s113 = sor.u32 %s111, %s112
      %p114 = scmp.eq.s32.totalorder %s113, 0
      %s116 = sadd.s32 %s115, 1
      %s117 = scalar_select %p114, %s115, %s116
      %p120 = pneg %p114
      %p121 = scmp.eq.s32.totalorder %s16, 1
      %p122 = por %p120, %p121
      %p123 = scmp.ne.s32.totalorder %s115, %s118
      %p124 = scmp.eq.s32.totalorder %s16, 0
      %p125 = por %p123, %p124
      %p126 = scmp.ne.s32.totalorder %s115, %s118
      %p127 = scmp.eq.s32.totalorder %s21, 1
      %p128 = por %p126, %p127
      %p129 = scmp.ne.s32.totalorder %s118, %s119
      %p130 = scmp.eq.s32.totalorder %s21, 0
      %p131 = por %p129, %p130
      %p132 = scmp.ne.s32.totalorder %s118, %s119
      %p133 = scmp.eq.s32.totalorder %s22, 1
      %p134 = por %p132, %p133
      %p136 = scmp.ne.s32.totalorder %s119, %s135
      %p137 = scmp.eq.s32.totalorder %s22, 0
      %p138 = por %p136, %p137
      %p139 = scmp.le.s32.totalorder 1, %s16
      %p140 = scmp.lt.s32.totalorder %s16, 3
      %p141 = pnand %p139, %p140
      %p142 = pneg %p141
      // Predicated region
      $region9: #{tpu_custom_call.1} parent=5 // pred_check
        _
      $region10: #{tpu_custom_call.1} parent=5 // pred_check_branch
        %144 = sbr.rel (%p141) target = $region12
      $region11: #{tpu_custom_call.1} parent=5 // pred_region
        %s145 = ssub.s32 %s16, 1
        // Predicated region
        $region13: #{tpu_custom_call.1} parent=11 // pred_check
          %p146 = pneg %p49
        $region14: #{tpu_custom_call.1} parent=11 // pred_check_branch
          %148 = sbr.rel (%p146) target = $region16
        $region15: #{tpu_custom_call.1} parent=11 // pred_region
          _
        $region16: #{tpu_custom_call.1} parent=11 // pred_fallthru
          _
        // Predicated region
        $region17: #{tpu_custom_call.1} parent=11 // pred_check
          %p149 = pneg %p103
        $region18: #{tpu_custom_call.1} parent=11 // pred_check_branch
          %151 = sbr.rel (%p149) target = $region20
        $region19: #{tpu_custom_call.1} parent=11 // pred_region
          %p152 = scmp.lt.s32.totalorder %s25, 0
          %s153 = scalar_select %p152, %s25, 0
          %s154 = smul.addr %s153, 2
          %s155 = scalar_lea.vmem %s2, %s154
        $region20: #{tpu_custom_call.1} parent=11 // pred_fallthru
          _
      $region12: #{tpu_custom_call.1} parent=5 // pred_fallthru
        _
      %p156 = scmp.lt.s32.totalorder %s16, 2
      // Predicated region
      $region21: #{tpu_custom_call.1} parent=5 // pred_check
        %p157 = pneg %p156
      $region22: #{tpu_custom_call.1} parent=5 // pred_check_branch
        %159 = sbr.rel (%p157) target = $region24
      $region23: #{tpu_custom_call.1} parent=5 // pred_region
        // Predicated region
        $region25: #{tpu_custom_call.1} parent=23 // pred_check
          %p160 = pneg %p71
        $region26: #{tpu_custom_call.1} parent=23 // pred_check_branch
          %162 = sbr.rel (%p160) target = $region28
        $region27: #{tpu_custom_call.1} parent=23 // pred_region
          %s163 = sand.u32 %s61, 1
          %s164 = scalar_lea.sflag [#allocation4], %s163
          %s165 = sand.u32 %s61, 1
          %s166 = smul.addr %s165, 2
          %s167 = scalar_lea.vmem [#allocation3], %s166
          %s169 = ssub.s32 32, 32
          %170 = vsyncadd %s164, %s169
          %s171 = smul.addr %s23, 2
          %s172 = smul.addr %s24, 2
          %s173 = sadd.s32 %s171, %s172
          %s174 = smul.addr %s173, 16
          %s175 = scalar_lea.hbm %s1, %s174
          %s177 = sshll.u32 %s167, 4
          %s178 = int_to_ptr.vmem [resolvable:$true] %s177
          %180 = dma.hbm_to_vmem [thread:$0]  %s175, 32, %s178, %s164
        $region28: #{tpu_custom_call.1} parent=23 // pred_fallthru
          _
      $region24: #{tpu_custom_call.1} parent=5 // pred_fallthru
        _
      %p181 = scmp.le.s32.totalorder 1, %s16
      %p182 = scmp.lt.s32.totalorder %s16, 3
      %p183 = pnand %p181, %p182
      %p184 = pneg %p183
      // Predicated region
      $region29: #{tpu_custom_call.1} parent=5 // pred_check
        _
      $region30: #{tpu_custom_call.1} parent=5 // pred_check_branch
        %186 = sbr.rel (%p183) target = $region32
      $region31: #{tpu_custom_call.1} parent=5 // pred_region
        %s187 = ssub.s32 %s16, 1
        %s188 = sand.u32 %s64, 1
        %s189 = scalar_lea.sflag [#allocation4], %s188
        %s190 = sand.u32 %s64, 1
        %s191 = smul.addr %s190, 2
        %s192 = scalar_lea.vmem [#allocation3], %s191
        // Predicated region
        $region33: #{tpu_custom_call.1} parent=31 // pred_check
          %p193 = pneg %p77
        $region34: #{tpu_custom_call.1} parent=31 // pred_check_branch
          %195 = sbr.rel (%p193) target = $region36
        $region35: #{tpu_custom_call.1} parent=31 // pred_region
          %196 = dma.done %s189, 32
        $region36: #{tpu_custom_call.1} parent=31 // pred_fallthru
          _
        %p197 = pneg %p49
        %p198 = pneg %p46
        %s199 = sand.u32 %s64, 1
        %s200 = scalar_lea.sflag [#allocation4], %s199
        %s201 = sand.u32 %s64, 1
        %s202 = smul.addr %s201, 2
        %s203 = scalar_lea.vmem [#allocation3], %s202
        %p204 = pneg %p77
        %p205 = pneg %p74
        %p206 = scmp.lt.s32.totalorder %s25, 0
        %s207 = scalar_select %p206, %s25, 0
        %s208 = smul.addr %s207, 2
        %s209 = scalar_lea.vmem %s2, %s208
        %p210 = pneg %p103
        %p211 = pneg %p100
        %p212 = pneg %p131
        %p213 = pneg %p128
        %s214 = sand.u32 %s118, 1
        %s215 = scalar_lea.sflag [#allocation5], %s214
        %s216 = sand.u32 %s118, 1
        %s217 = smul.addr %s216, 2
        %s218 = scalar_lea.vmem [#allocation6], %s217
        %p219 = scmp.lt.s32.totalorder %s25, 0
        %s220 = scalar_select %p219, %s25, 0
        %s221 = smul.addr %s220, 2
        %s222 = scalar_lea.vmem %s2, %s221
        %v223 = vld [vmem:[%s192] sm:$0x3]
        %v224 = vld [vmem:[%s222] sm:$0x3]
        %v225 = vadd.f32 %v223, %v224
        %v226 = vlaneseq
        %vm227 = vcmp.ge.s32.totalorder %v226, 0
        %vm228 = vcmp.lt.s32.totalorder %v226, 256
        %vm229 = vmand %vm227, %vm228
        %230 = vst.msk [vmem:[%s218] sm:$0x3] %vm229, %v225
        %s231 = sand.u32 %s118, 1
        %s232 = scalar_lea.sflag [#allocation5], %s231
        %s233 = sand.u32 %s118, 1
        %s234 = smul.addr %s233, 2
        %s235 = scalar_lea.vmem [#allocation6], %s234
        // Predicated region
        $region37: #{tpu_custom_call.1} parent=31 // pred_check
          %p236 = pneg %p128
        $region38: #{tpu_custom_call.1} parent=31 // pred_check_branch
          %238 = sbr.rel (%p236) target = $region40
        $region39: #{tpu_custom_call.1} parent=31 // pred_region
          %s240 = ssub.s32 32, 32
          %241 = vsyncadd %s232, %s240
          %s242 = smul.addr %s25, 2
          %s243 = smul.addr %s26, 2
          %s244 = sadd.s32 %s242, %s243
          %s245 = smul.addr %s244, 16
          %s246 = scalar_lea.hbm %s3, %s245
          %s248 = sshll.u32 %s235, 4
          %s249 = int_to_ptr.vmem [resolvable:$true] %s248
          %251 = dma.vmem_to_hbm [thread:$0]  %s249, 32, %s246, %s232
        $region40: #{tpu_custom_call.1} parent=31 // pred_fallthru
          _
      $region32: #{tpu_custom_call.1} parent=5 // pred_fallthru
        _
      %p252 = scmp.le.s32.totalorder 2, %s16
      // Predicated region
      $region41: #{tpu_custom_call.1} parent=5 // pred_check
        %p253 = pneg %p252
      $region42: #{tpu_custom_call.1} parent=5 // pred_check_branch
        %255 = sbr.rel (%p253) target = $region44
      $region43: #{tpu_custom_call.1} parent=5 // pred_region
        %s256 = ssub.s32 %s16, 2
        // Predicated region
        $region45: #{tpu_custom_call.1} parent=43 // pred_check
          %p257 = pneg %p134
        $region46: #{tpu_custom_call.1} parent=43 // pred_check_branch
          %259 = sbr.rel (%p257) target = $region48
        $region47: #{tpu_custom_call.1} parent=43 // pred_region
          %s260 = sand.u32 %s119, 1
          %s261 = scalar_lea.sflag [#allocation5], %s260
          %s262 = sand.u32 %s119, 1
          %s263 = smul.addr %s262, 2
          %s264 = scalar_lea.vmem [#allocation6], %s263
          %265 = dma.done %s261, 32
        $region48: #{tpu_custom_call.1} parent=43 // pred_fallthru
          _
      $region44: #{tpu_custom_call.1} parent=5 // pred_fallthru
        _
    $region6: #{tpu_custom_call.1} parent=1 // loop_footer
      %s20 = sadd.s32 1, %s16
    $region7: #{tpu_custom_call.1} parent=1 // loop_footer_branch
      %15 = sbr.rel target = $region3
    $region8: #{tpu_custom_call.1} parent=1 // loop_exit
      _
    %266 = vsyncpa [#allocation4], 1
    %s267 = scalar_lea.sflag [#allocation4], 1
    %268 = vsyncpa %s267, 1
    %269 = vsyncpa [#allocation5], 1
    %s270 = scalar_lea.sflag [#allocation5], 1
    %271 = vsyncpa %s270, 1

</llo_original>
